<compile_context>
chip_gen: v7x
topology: tpu7x:2x2x1
jax: 0.10.0
libtpu: 0.0.40
codegen_flags: <defaults>
</compile_context>

<pallas_src>
import functools

import jax
import jax.numpy as jnp
import numpy as np
from jax.experimental import pallas as pl
from jax.experimental.pallas import tpu as pltpu


def copy_kernel(x_ref, o_ref):
    # Whole-tile copy.  This is where a non-trivial Lambda func would be fused; for the
    # tutorial's flatten the data is already in its final layout.
    o_ref[...] = x_ref[...]


def _sublane_multiple(dtype):
    # Sub-32-bit dtypes pack along sublanes: 8 rows for f32, 16 for bf16, 32 for int8/fp8.
    itemsize = jnp.dtype(dtype).itemsize
    return max(8, 32 // max(1, itemsize))


def _round_up(x, m):
    return ((x + m - 1) // m) * m


def _per_buffer_target_bytes():
    # v7x HBM (~3.2 TB/s/TC) amortizes the ~0.35 us per-grid-step cost over ~2x more
    # bytes than v6e, so use 4 MiB tiles there; keep 2 MiB on v5e/v6e (16 MiB default
    # scoped VMEM on v5e).  Detection is a best-effort heuristic; a miss is only a
    # minor perf difference, never a correctness issue.
    try:
        kind = jax.devices()[0].device_kind.lower()
        if "v7" in kind or "tpu7" in kind or "7x" in kind:
            return 4 << 20
    except Exception:
        pass
    return 2 << 20


def _pick_tiles(N, D, dtype, per_buffer_target):
    itemsize = jnp.dtype(dtype).itemsize
    sub = _sublane_multiple(dtype)

    # Lane-axis blocking only when even a minimal (sub, D) tile blows the budget AND
    # D is a clean multiple of 128 (so every block stays lane-dense).
    if D % 128 == 0 and sub * D * itemsize > per_buffer_target:
        TD = max(128, ((per_buffer_target // (sub * itemsize)) // 128) * 128)
        TD = min(TD, D)
    else:
        TD = D  # full-extent lane block: always legal, even if D % 128 != 0 (e.g. 784)

    rows_budget = max(sub, per_buffer_target // max(1, TD * itemsize))
    TN = min(N, (rows_budget // sub) * sub)
    if TN < N:
        TN = max(sub, TN)

    # If the whole batch fits in one row-block, still split into >= 2 blocks when the
    # batch is big enough, so the "parallel" row axis can shard across v7x's two TCs.
    if TN >= N and N > sub:
        TN = max(sub, _round_up(pl.cdiv(N, 2), sub))

    return TN, TD


@functools.partial(jax.jit, static_argnames=())
def lambda_flatten(x):
    """Pallas equivalent of Lambda(lambda x: x.view(x.size(0), -1)) for NCHW input."""
    N, C, H, W = x.shape
    D = C * H * W
    itemsize = jnp.dtype(x.dtype).itemsize

    # Free metadata reshape (row-major, identical to torch .view on contiguous NCHW).
    x2 = jnp.reshape(x, (N, D))

    per_buffer_target = _per_buffer_target_bytes()
    TN, TD = _pick_tiles(N, D, x.dtype, per_buffer_target)
    grid = (pl.cdiv(N, TN), pl.cdiv(D, TD))

    return pl.pallas_call(
        copy_kernel,
        out_shape=jax.ShapeDtypeStruct((N, D), x.dtype),
        grid=grid,
        in_specs=[pl.BlockSpec((TN, TD), lambda i, j: (i, j))],
        out_specs=pl.BlockSpec((TN, TD), lambda i, j: (i, j)),
        # Donate the input buffer: no fresh HBM allocation for a pure copy.
        input_output_aliases={0: 0},
        # Tell XLA this is a pure-bandwidth op so it can overlap it with neighbors.
        cost_estimate=pl.CostEstimate(
            flops=0, transcendentals=0, bytes_accessed=2 * N * D * itemsize
        ),
        compiler_params=pltpu.CompilerParams(
            dimension_semantics=("parallel", "parallel"),
            # Explicit budget: 4 buffers (in+out, double-buffered) at <= 4 MiB each fits
            # comfortably; 32 MiB is within physical VMEM on every generation (v7x: 64 MiB).
            vmem_limit_bytes=32 << 20,
        ),
    )(x2)


if __name__ == "__main__":
    key = jax.random.PRNGKey(0)
    # Small NCHW activation feeding the Lambda.
    N, C, H, W = 2, 4, 16, 16
    x = jax.random.normal(key, (N, C, H, W), dtype=jnp.float32)

    y = lambda_flatten(x)
    y = jax.block_until_ready(y)

    # Reference: torch's x.view(x.size(0), -1) on contiguous NCHW == row-major reshape.
    y_ref = jnp.reshape(x, (N, C * H * W))
    np.testing.assert_allclose(np.asarray(y), np.asarray(y_ref), rtol=0, atol=0)
    assert y.shape == (N, C * H * W) and y.dtype == x.dtype

    print("KERNEL_OK")
</pallas_src>

<mosaic_0001>
module attributes {stable_mosaic.version = 11 : i64} {
  func.func @copy_kernel(%arg0: i32, %arg1: i32, %arg2: memref<2x1024xf32, #tpu.memory_space<vmem>>, %arg3: memref<2x1024xf32, #tpu.memory_space<vmem>>) attributes {dimension_semantics = [#tpu.dimension_semantics<parallel>, #tpu.dimension_semantics<parallel>], iteration_bounds = array<i64: 1, 1>, scalar_prefetch = 0 : i64, scratch_operands = 0 : i64, tpu.core_type = #tpu.core_type<tc>, window_params = [{transform_indices = @transform_0, window_bounds = array<i64: 2, 1024>}, {transform_indices = @transform_1, window_bounds = array<i64: 2, 1024>}]} {
    %c0 = arith.constant 0 : index
    %c0_0 = arith.constant 0 : index
    %0 = vector.load %arg2[%c0, %c0_0] : memref<2x1024xf32, #tpu.memory_space<vmem>>, vector<2x1024xf32>
    %c0_1 = arith.constant 0 : index
    %c0_2 = arith.constant 0 : index
    %1 = vector.load %arg3[%c0_1, %c0_2] : memref<2x1024xf32, #tpu.memory_space<vmem>>, vector<2x1024xf32>
    tpu.vector_store %arg3[%c0_1, %c0_2], %0 {strides = array<i32>} : memref<2x1024xf32, #tpu.memory_space<vmem>>, vector<2x1024xf32>,
    return
  }
  func.func @transform_0(%arg0: i32, %arg1: i32) -> (i32, i32) {
    %c0_i32 = arith.constant 0 : i32
    return %arg0, %arg1 : i32, i32
  }
  func.func @transform_1(%arg0: i32, %arg1: i32) -> (i32, i32) {
    %c0_i32 = arith.constant 0 : i32
    return %arg0, %arg1 : i32, i32
  }
}

</mosaic_0001>

<llo_original>
// kernel: lambda_flatten.1
$region0: #{lambda_flatten.1}
  #allocation0 [shape = 'u32[]', space=smem, size = 0x4, offset = 0x4, fixed_abs, tag = 'smem constant byte address 0x4 - core index']
  #allocation1 [shape = 'u32[144,128]{1,0:T(1,128)}', space=vmem, size = 0x12000, scoped, tag = 'internal scratch']
  %s0 = inlined_call_operand.hbm [shape: f32[2,1024], index: 0, kind: input, shape index: {}, may-alias: {0,1}]
  %s1 = inlined_call_operand.hbm [shape: f32[2,1024], index: 1, kind: output, shape index: {}, may-alias: {0,1}]
  %s2 = sld [smem:[#allocation0]]
  $region18: #{lambda_flatten.1} parent=0
    _
  %s4 = ssub.s32 1, %s2
  %s5 = scalar_select 0, %s4, %s2
  $region1: #{lambda_flatten.1} parent=0
    #allocation2 [shape = 'u8[8192]{0}', space=vmem, size = 0x2000, scoped, tag = 'input window, operand 0, single buffered']
    #allocation3 [shape = 's32[1]{0}', space=sflag, size = 0x4, scoped, tag = 'scoped memory for lambda_flatten.1']
    #allocation4 [shape = 's32[1]{0}', space=sflag, size = 0x4, scoped, tag = 'scoped memory for lambda_flatten.1']
    #allocation5 [shape = 'u8[8192]{0}', space=vmem, size = 0x2000, scoped, tag = 'output window, operand 0, single buffered']
    %6 = vsyncpa [#allocation3], 0
    %7 = vsyncpa [#allocation4], 0
    // Predicated region
    $region2: #{lambda_flatten.1} parent=1 // pred_check
      _
    $region3: #{lambda_flatten.1} parent=1 // pred_check_branch
      %9 = sbr.rel (0) target = $region5
    $region4: #{lambda_flatten.1} parent=1 // pred_region
      %s11 = ssub.s32 256, 256
      %12 = vsyncadd [#allocation3], %s11
      %s14 = sshll.u32 [#allocation2], 4
      %s15 = int_to_ptr.vmem [resolvable:$true] %s14
      %17 = dma.hbm_to_vmem [thread:$0]  %s0, 256, %s15, [#allocation3]
    $region5: #{lambda_flatten.1} parent=1 // pred_fallthru
      _
    // Predicated region
    $region6: #{lambda_flatten.1} parent=1 // pred_check
      _
    $region7: #{lambda_flatten.1} parent=1 // pred_check_branch
      %19 = sbr.rel (0) target = $region9
    $region8: #{lambda_flatten.1} parent=1 // pred_region
      %20 = dma.done [#allocation3], 256
    $region9: #{lambda_flatten.1} parent=1 // pred_fallthru
      _
    %v21 = vld [vmem:[#allocation2] sm:$0xff]
    %v22 = vld [vmem:[#allocation2 + $0x8] sm:$0xff]
    %23 = vst [vmem:[#allocation5] sm:$0xff] %v21
    %24 = vst [vmem:[#allocation5 + $0x8] sm:$0xff] %v22
    // Predicated region
    $region10: #{lambda_flatten.1} parent=1 // pred_check
      _
    $region11: #{lambda_flatten.1} parent=1 // pred_check_branch
      %26 = sbr.rel (0) target = $region13
    $region12: #{lambda_flatten.1} parent=1 // pred_region
      %s28 = ssub.s32 256, 256
      %29 = vsyncadd [#allocation4], %s28
      %s31 = sshll.u32 [#allocation5], 4
      %s32 = int_to_ptr.vmem [resolvable:$true] %s31
      %34 = dma.vmem_to_hbm [thread:$0]  %s32, 256, %s1, [#allocation4]
    $region13: #{lambda_flatten.1} parent=1 // pred_fallthru
      _
    // Predicated region
    $region14: #{lambda_flatten.1} parent=1 // pred_check
      _
    $region15: #{lambda_flatten.1} parent=1 // pred_check_branch
      %36 = sbr.rel (0) target = $region17
    $region16: #{lambda_flatten.1} parent=1 // pred_region
      %37 = dma.done [#allocation4], 256
    $region17: #{lambda_flatten.1} parent=1 // pred_fallthru
      _
    %38 = vsyncpa [#allocation3], 1
    %39 = vsyncpa [#allocation4], 1

</llo_original>
